<compile_context>
chip_gen: v7x
topology: tpu7x:2x2x1
jax: 0.10.0
libtpu: 0.0.40
codegen_flags: <defaults>
</compile_context>

<pallas_src>
import jax
import jax.numpy as jnp
from jax import lax
from jax.experimental import pallas as pl
from jax.experimental.pallas import tpu as pltpu


def lstm_fc_kernel(x_ref, wih_ref, whh_ref, b_ref, wfc_ref, bfc_ref,
                   out_ref, pre_ref):
    """Full T-step LSTM recurrence + final Linear in one kernel.

    x_ref   : (T, I)      input sequence
    wih_ref : (I, 4H)     input->gates weights (transposed w.r.t. PyTorch)
    whh_ref : (H, 4H)     hidden->gates weights (transposed w.r.t. PyTorch)
    b_ref   : (1, 4H)     combined bias (b_ih + b_hh)
    wfc_ref : (H, O)      fc weights (transposed w.r.t. PyTorch)
    bfc_ref : (1, O)      fc bias
    out_ref : (1, O)      prediction at the last time step
    pre_ref : (T, 4H)     VMEM scratch for the hoisted input projection
    """
    T = x_ref.shape[0]
    H = whh_ref.shape[0]

    # Hoist the input projection out of the recurrence: one (T,I)@(I,4H)
    # matmul + bias add, instead of T small matmuls on the serial chain.
    pre_ref[...] = (
        jnp.dot(x_ref[...], wih_ref[...], preferred_element_type=jnp.float32)
        + b_ref[...]
    )

    def step(t, carry):
        h, c = carry                                       # (1, H), (1, H)
        gates = pre_ref[pl.ds(t, 1), :] + jnp.dot(
            h, whh_ref[...], preferred_element_type=jnp.float32)  # (1, 4H)
        # Full-width activations: one sigmoid + one tanh over the whole
        # (1, 4H) = (1, 128) vector (single EUP pass each), then slice lanes.
        sig = jax.nn.sigmoid(gates)
        tnh = jnp.tanh(gates)
        i_g = sig[:, 0:H]
        f_g = sig[:, H:2 * H]
        g_g = tnh[:, 2 * H:3 * H]
        o_g = sig[:, 3 * H:4 * H]
        c_new = f_g * c + i_g * g_g
        h_new = o_g * jnp.tanh(c_new)
        return (h_new, c_new)

    h0 = jnp.zeros((1, H), jnp.float32)
    c0 = jnp.zeros((1, H), jnp.float32)
    # T is static and small: fully unroll so adjacent steps interleave.
    h_T, _ = lax.fori_loop(0, T, step, (h0, c0), unroll=True)

    out_ref[...] = (
        jnp.dot(h_T, wfc_ref[...], preferred_element_type=jnp.float32)
        + bfc_ref[...]
    ).astype(out_ref.dtype)


def prepare_params(w_ih, w_hh, b_ih, b_hh, w_fc, b_fc):
    """One-time parameter prep (do at load time, not per forward call).

    w_ih : (4H, I)   w_hh : (4H, H)   b_ih, b_hh : (4H,)   [PyTorch layout]
    w_fc : (O, H)    b_fc : (O,)
    """
    wih_t = jnp.asarray(w_ih, jnp.float32).T                      # (I, 4H)
    whh_t = jnp.asarray(w_hh, jnp.float32).T                      # (H, 4H)
    b = (jnp.asarray(b_ih, jnp.float32)
         + jnp.asarray(b_hh, jnp.float32)).reshape(1, -1)         # (1, 4H)
    wfc_t = jnp.asarray(w_fc, jnp.float32).T                      # (H, O)
    bfc = jnp.asarray(b_fc, jnp.float32).reshape(1, -1)           # (1, O)
    return wih_t, whh_t, b, wfc_t, bfc


@jax.jit
def lstm_forward(x, wih_t, whh_t, b, wfc_t, bfc):
    """Matches PyTorch LSTM.forward semantics (returns predictions[-1]).

    x : (T, input_size); params as returned by prepare_params.
    returns: (O,)
    """
    T = x.shape[0]
    H = whh_t.shape[0]
    O = wfc_t.shape[1]

    vmem = pl.BlockSpec(memory_space=pltpu.MemorySpace.VMEM)
    out = pl.pallas_call(
        lstm_fc_kernel,
        out_shape=jax.ShapeDtypeStruct((1, O), jnp.float32),
        in_specs=[vmem] * 6,
        out_specs=vmem,
        scratch_shapes=[pltpu.VMEM((T, 4 * H), jnp.float32)],
    )(jnp.asarray(x, jnp.float32), wih_t, whh_t, b, wfc_t, bfc)
    return out[0]                                         # (O,) == predictions[-1]


def _reference_forward(x, w_ih, w_hh, b_ih, b_hh, w_fc, b_fc):
    """Pure-JAX reference reproducing PyTorch nn.LSTM + nn.Linear math."""
    H = w_hh.shape[1]
    h = jnp.zeros((H,), jnp.float32)
    c = jnp.zeros((H,), jnp.float32)
    for t in range(x.shape[0]):
        g = w_ih @ x[t] + b_ih + w_hh @ h + b_hh
        i = jax.nn.sigmoid(g[0:H])
        f = jax.nn.sigmoid(g[H:2 * H])
        gg = jnp.tanh(g[2 * H:3 * H])
        o = jax.nn.sigmoid(g[3 * H:4 * H])
        c = f * c + i * gg
        h = o * jnp.tanh(c)
    return w_fc @ h + b_fc


if __name__ == "__main__":
    # Small, deterministic config consistent with the module.
    input_size, hidden_dim, output_size, seq_len = 8, 32, 4, 8

    key = jax.random.PRNGKey(0)
    ks = jax.random.split(key, 8)
    bound = 1.0 / jnp.sqrt(hidden_dim)

    x = jax.random.normal(ks[0], (seq_len, input_size), jnp.float32)
    w_ih = jax.random.uniform(ks[1], (4 * hidden_dim, input_size), jnp.float32,
                              -bound, bound)
    w_hh = jax.random.uniform(ks[2], (4 * hidden_dim, hidden_dim), jnp.float32,
                              -bound, bound)
    b_ih = jax.random.uniform(ks[3], (4 * hidden_dim,), jnp.float32, -bound, bound)
    b_hh = jax.random.uniform(ks[4], (4 * hidden_dim,), jnp.float32, -bound, bound)
    w_fc = jax.random.uniform(ks[5], (output_size, hidden_dim), jnp.float32,
                              -bound, bound)
    b_fc = jax.random.uniform(ks[6], (output_size,), jnp.float32, -bound, bound)

    # Parameter prep happens once, outside the per-call path.
    params = prepare_params(w_ih, w_hh, b_ih, b_hh, w_fc, b_fc)

    pred = lstm_forward(x, *params)
    pred = jax.block_until_ready(pred)

    ref = _reference_forward(x, w_ih, w_hh, b_ih, b_hh, w_fc, b_fc)
    assert pred.shape == (output_size,)
    assert jnp.allclose(pred, ref, atol=1e-5, rtol=1e-5), (pred, ref)

    print("KERNEL_OK")
</pallas_src>

<mosaic_0001>
module attributes {stable_mosaic.version = 11 : i64} {
  func.func @lstm_fc_kernel(%arg0: memref<8x8xf32, #tpu.memory_space<vmem>>, %arg1: memref<8x128xf32, #tpu.memory_space<vmem>>, %arg2: memref<32x128xf32, #tpu.memory_space<vmem>>, %arg3: memref<1x128xf32, #tpu.memory_space<vmem>>, %arg4: memref<32x4xf32, #tpu.memory_space<vmem>>, %arg5: memref<1x4xf32, #tpu.memory_space<vmem>>, %arg6: memref<1x4xf32, #tpu.memory_space<vmem>>, %arg7: memref<8x128xf32, #tpu.memory_space<vmem>>) attributes {dimension_semantics = [], scalar_prefetch = 0 : i64, scratch_operands = 1 : i64, tpu.core_type = #tpu.core_type<tc>} {
    %c0 = arith.constant 0 : index
    %c0_0 = arith.constant 0 : index
    %0 = vector.load %arg0[%c0, %c0_0] : memref<8x8xf32, #tpu.memory_space<vmem>>, vector<8x8xf32>
    %c0_1 = arith.constant 0 : index
    %c0_2 = arith.constant 0 : index
    %1 = vector.load %arg1[%c0_1, %c0_2] : memref<8x128xf32, #tpu.memory_space<vmem>>, vector<8x128xf32>
    %cst = arith.constant dense<0.000000e+00> : vector<8x128xf32>
    %2 = tpu.matmul %0, %1, %cst {dimension_numbers = #tpu.dot_dimension_numbers<[1], [0], [0], [1], [0, 0, 1, 1], [], []>} : vector<8x8xf32>, vector<8x128xf32>, vector<8x128xf32> -> vector<8x128xf32>
    %c0_3 = arith.constant 0 : index
    %c0_4 = arith.constant 0 : index
    %3 = vector.load %arg3[%c0_3, %c0_4] : memref<1x128xf32, #tpu.memory_space<vmem>>, vector<1x128xf32>
    %4 = vector.broadcast %3 : vector<1x128xf32> to vector<8x128xf32>
    %5 = arith.addf %2, %4 : vector<8x128xf32>
    %c0_5 = arith.constant 0 : index
    %c0_6 = arith.constant 0 : index
    %6 = vector.load %arg7[%c0_5, %c0_6] : memref<8x128xf32, #tpu.memory_space<vmem>>, vector<8x128xf32>
    tpu.vector_store %arg7[%c0_5, %c0_6], %5 {strides = array<i32>} : memref<8x128xf32, #tpu.memory_space<vmem>>, vector<8x128xf32>,
    %cst_7 = arith.constant 0.000000e+00 : f32
    %7 = vector.broadcast %cst_7 : f32 to vector<1x32xf32>
    %cst_8 = arith.constant 0.000000e+00 : f32
    %8 = vector.broadcast %cst_8 : f32 to vector<1x32xf32>
    %c0_i32 = arith.constant 0 : i32
    %9 = arith.index_cast %c0_i32 : i32 to index
    %c0_9 = arith.constant 0 : index
    %10 = vector.load %arg7[%9, %c0_9] : memref<8x128xf32, #tpu.memory_space<vmem>>, vector<1x128xf32>
    %c0_10 = arith.constant 0 : index
    %c0_11 = arith.constant 0 : index
    %11 = vector.load %arg2[%c0_10, %c0_11] : memref<32x128xf32, #tpu.memory_space<vmem>>, vector<32x128xf32>
    %cst_12 = arith.constant dense<0.000000e+00> : vector<1x128xf32>
    %12 = tpu.matmul %7, %11, %cst_12 {dimension_numbers = #tpu.dot_dimension_numbers<[1], [0], [0], [1], [0, 0, 1, 1], [], []>} : vector<1x32xf32>, vector<32x128xf32>, vector<1x128xf32> -> vector<1x128xf32>
    %13 = arith.addf %10, %12 : vector<1x128xf32>
    %14 = arith.negf %13 : vector<1x128xf32>
    %15 = math.exp %14 : vector<1x128xf32>
    %cst_13 = arith.constant 1.000000e+00 : f32
    %16 = vector.broadcast %cst_13 : f32 to vector<1x128xf32>
    %17 = arith.addf %16, %15 : vector<1x128xf32>
    %18 = arith.divf %16, %17 : vector<1x128xf32>
    %19 = math.tanh %13 : vector<1x128xf32>
    %20 = vector.extract_strided_slice %18 {offsets = [0, 0], sizes = [1, 32], strides = [1, 1]} : vector<1x128xf32> to vector<1x32xf32>
    %21 = vector.extract_strided_slice %18 {offsets = [0, 32], sizes = [1, 32], strides = [1, 1]} : vector<1x128xf32> to vector<1x32xf32>
    %22 = vector.extract_strided_slice %19 {offsets = [0, 64], sizes = [1, 32], strides = [1, 1]} : vector<1x128xf32> to vector<1x32xf32>
    %23 = vector.extract_strided_slice %18 {offsets = [0, 96], sizes = [1, 32], strides = [1, 1]} : vector<1x128xf32> to vector<1x32xf32>
    %24 = arith.mulf %21, %8 : vector<1x32xf32>
    %25 = arith.mulf %20, %22 : vector<1x32xf32>
    %26 = arith.addf %24, %25 : vector<1x32xf32>
    %27 = math.tanh %26 : vector<1x32xf32>
    %28 = arith.mulf %23, %27 : vector<1x32xf32>
    %c1_i32 = arith.constant 1 : i32
    %29 = arith.index_cast %c1_i32 : i32 to index
    %c0_14 = arith.constant 0 : index
    %30 = vector.load %arg7[%29, %c0_14] : memref<8x128xf32, #tpu.memory_space<vmem>>, vector<1x128xf32>
    %c0_15 = arith.constant 0 : index
    %c0_16 = arith.constant 0 : index
    %31 = vector.load %arg2[%c0_15, %c0_16] : memref<32x128xf32, #tpu.memory_space<vmem>>, vector<32x128xf32>
    %cst_17 = arith.constant dense<0.000000e+00> : vector<1x128xf32>
    %32 = tpu.matmul %28, %31, %cst_17 {dimension_numbers = #tpu.dot_dimension_numbers<[1], [0], [0], [1], [0, 0, 1, 1], [], []>} : vector<1x32xf32>, vector<32x128xf32>, vector<1x128xf32> -> vector<1x128xf32>
    %33 = arith.addf %30, %32 : vector<1x128xf32>
    %34 = arith.negf %33 : vector<1x128xf32>
    %35 = math.exp %34 : vector<1x128xf32>
    %cst_18 = arith.constant 1.000000e+00 : f32
    %36 = vector.broadcast %cst_18 : f32 to vector<1x128xf32>
    %37 = arith.addf %36, %35 : vector<1x128xf32>
    %38 = arith.divf %36, %37 : vector<1x128xf32>
    %39 = math.tanh %33 : vector<1x128xf32>
    %40 = vector.extract_strided_slice %38 {offsets = [0, 0], sizes = [1, 32], strides = [1, 1]} : vector<1x128xf32> to vector<1x32xf32>
    %41 = vector.extract_strided_slice %38 {offsets = [0, 32], sizes = [1, 32], strides = [1, 1]} : vector<1x128xf32> to vector<1x32xf32>
    %42 = vector.extract_strided_slice %39 {offsets = [0, 64], sizes = [1, 32], strides = [1, 1]} : vector<1x128xf32> to vector<1x32xf32>
    %43 = vector.extract_strided_slice %38 {offsets = [0, 96], sizes = [1, 32], strides = [1, 1]} : vector<1x128xf32> to vector<1x32xf32>
    %44 = arith.mulf %41, %26 : vector<1x32xf32>
    %45 = arith.mulf %40, %42 : vector<1x32xf32>
    %46 = arith.addf %44, %45 : vector<1x32xf32>
    %47 = math.tanh %46 : vector<1x32xf32>
    %48 = arith.mulf %43, %47 : vector<1x32xf32>
    %c2_i32 = arith.constant 2 : i32
    %49 = arith.index_cast %c2_i32 : i32 to index
    %c0_19 = arith.constant 0 : index
    %50 = vector.load %arg7[%49, %c0_19] : memref<8x128xf32, #tpu.memory_space<vmem>>, vector<1x128xf32>
    %c0_20 = arith.constant 0 : index
    %c0_21 = arith.constant 0 : index
    %51 = vector.load %arg2[%c0_20, %c0_21] : memref<32x128xf32, #tpu.memory_space<vmem>>, vector<32x128xf32>
    %cst_22 = arith.constant dense<0.000000e+00> : vector<1x128xf32>
    %52 = tpu.matmul %48, %51, %cst_22 {dimension_numbers = #tpu.dot_dimension_numbers<[1], [0], [0], [1], [0, 0, 1, 1], [], []>} : vector<1x32xf32>, vector<32x128xf32>, vector<1x128xf32> -> vector<1x128xf32>
    %53 = arith.addf %50, %52 : vector<1x128xf32>
    %54 = arith.negf %53 : vector<1x128xf32>
    %55 = math.exp %54 : vector<1x128xf32>
    %cst_23 = arith.constant 1.000000e+00 : f32
    %56 = vector.broadcast %cst_23 : f32 to vector<1x128xf32>
    %57 = arith.addf %56, %55 : vector<1x128xf32>
    %58 = arith.divf %56, %57 : vector<1x128xf32>
    %59 = math.tanh %53 : vector<1x128xf32>
    %60 = vector.extract_strided_slice %58 {offsets = [0, 0], sizes = [1, 32], strides = [1, 1]} : vector<1x128xf32> to vector<1x32xf32>
    %61 = vector.extract_strided_slice %58 {offsets = [0, 32], sizes = [1, 32], strides = [1, 1]} : vector<1x128xf32> to vector<1x32xf32>
    %62 = vector.extract_strided_slice %59 {offsets = [0, 64], sizes = [1, 32], strides = [1, 1]} : vector<1x128xf32> to vector<1x32xf32>
    %63 = vector.extract_strided_slice %58 {offsets = [0, 96], sizes = [1, 32], strides = [1, 1]} : vector<1x128xf32> to vector<1x32xf32>
    %64 = arith.mulf %61, %46 : vector<1x32xf32>
    %65 = arith.mulf %60, %62 : vector<1x32xf32>
    %66 = arith.addf %64, %65 : vector<1x32xf32>
    %67 = math.tanh %66 : vector<1x32xf32>
    %68 = arith.mulf %63, %67 : vector<1x32xf32>
    %c3_i32 = arith.constant 3 : i32
    %69 = arith.index_cast %c3_i32 : i32 to index
    %c0_24 = arith.constant 0 : index
    %70 = vector.load %arg7[%69, %c0_24] : memref<8x128xf32, #tpu.memory_space<vmem>>, vector<1x128xf32>
    %c0_25 = arith.constant 0 : index
    %c0_26 = arith.constant 0 : index
    %71 = vector.load %arg2[%c0_25, %c0_26] : memref<32x128xf32, #tpu.memory_space<vmem>>, vector<32x128xf32>
    %cst_27 = arith.constant dense<0.000000e+00> : vector<1x128xf32>
    %72 = tpu.matmul %68, %71, %cst_27 {dimension_numbers = #tpu.dot_dimension_numbers<[1], [0], [0], [1], [0, 0, 1, 1], [], []>} : vector<1x32xf32>, vector<32x128xf32>, vector<1x128xf32> -> vector<1x128xf32>
    %73 = arith.addf %70, %72 : vector<1x128xf32>
    %74 = arith.negf %73 : vector<1x128xf32>
    %75 = math.exp %74 : vector<1x128xf32>
    %cst_28 = arith.constant 1.000000e+00 : f32
    %76 = vector.broadcast %cst_28 : f32 to vector<1x128xf32>
    %77 = arith.addf %76, %75 : vector<1x128xf32>
    %78 = arith.divf %76, %77 : vector<1x128xf32>
    %79 = math.tanh %73 : vector<1x128xf32>
    %80 = vector.extract_strided_slice %78 {offsets = [0, 0], sizes = [1, 32], strides = [1, 1]} : vector<1x128xf32> to vector<1x32xf32>
    %81 = vector.extract_strided_slice %78 {offsets = [0, 32], sizes = [1, 32], strides = [1, 1]} : vector<1x128xf32> to vector<1x32xf32>
    %82 = vector.extract_strided_slice %79 {offsets = [0, 64], sizes = [1, 32], strides = [1, 1]} : vector<1x128xf32> to vector<1x32xf32>
    %83 = vector.extract_strided_slice %78 {offsets = [0, 96], sizes = [1, 32], strides = [1, 1]} : vector<1x128xf32> to vector<1x32xf32>
    %84 = arith.mulf %81, %66 : vector<1x32xf32>
    %85 = arith.mulf %80, %82 : vector<1x32xf32>
    %86 = arith.addf %84, %85 : vector<1x32xf32>
    %87 = math.tanh %86 : vector<1x32xf32>
    %88 = arith.mulf %83, %87 : vector<1x32xf32>
    %c4_i32 = arith.constant 4 : i32
    %89 = arith.index_cast %c4_i32 : i32 to index
    %c0_29 = arith.constant 0 : index
    %90 = vector.load %arg7[%89, %c0_29] : memref<8x128xf32, #tpu.memory_space<vmem>>, vector<1x128xf32>
    %c0_30 = arith.constant 0 : index
    %c0_31 = arith.constant 0 : index
    %91 = vector.load %arg2[%c0_30, %c0_31] : memref<32x128xf32, #tpu.memory_space<vmem>>, vector<32x128xf32>
    %cst_32 = arith.constant dense<0.000000e+00> : vector<1x128xf32>
    %92 = tpu.matmul %88, %91, %cst_32 {dimension_numbers = #tpu.dot_dimension_numbers<[1], [0], [0], [1], [0, 0, 1, 1], [], []>} : vector<1x32xf32>, vector<32x128xf32>, vector<1x128xf32> -> vector<1x128xf32>
    %93 = arith.addf %90, %92 : vector<1x128xf32>
    %94 = arith.negf %93 : vector<1x128xf32>
    %95 = math.exp %94 : vector<1x128xf32>
    %cst_33 = arith.constant 1.000000e+00 : f32
    %96 = vector.broadcast %cst_33 : f32 to vector<1x128xf32>
    %97 = arith.addf %96, %95 : vector<1x128xf32>
    %98 = arith.divf %96, %97 : vector<1x128xf32>
    %99 = math.tanh %93 : vector<1x128xf32>
    %100 = vector.extract_strided_slice %98 {offsets = [0, 0], sizes = [1, 32], strides = [1, 1]} : vector<1x128xf32> to vector<1x32xf32>
    %101 = vector.extract_strided_slice %98 {offsets = [0, 32], sizes = [1, 32], strides = [1, 1]} : vector<1x128xf32> to vector<1x32xf32>
    %102 = vector.extract_strided_slice %99 {offsets = [0, 64], sizes = [1, 32], strides = [1, 1]} : vector<1x128xf32> to vector<1x32xf32>
    %103 = vector.extract_strided_slice %98 {offsets = [0, 96], sizes = [1, 32], strides = [1, 1]} : vector<1x128xf32> to vector<1x32xf32>
    %104 = arith.mulf %101, %86 : vector<1x32xf32>
    %105 = arith.mulf %100, %102 : vector<1x32xf32>
    %106 = arith.addf %104, %105 : vector<1x32xf32>
    %107 = math.tanh %106 : vector<1x32xf32>
    %108 = arith.mulf %103, %107 : vector<1x32xf32>
    %c5_i32 = arith.constant 5 : i32
    %109 = arith.index_cast %c5_i32 : i32 to index
    %c0_34 = arith.constant 0 : index
    %110 = vector.load %arg7[%109, %c0_34] : memref<8x128xf32, #tpu.memory_space<vmem>>, vector<1x128xf32>
    %c0_35 = arith.constant 0 : index
    %c0_36 = arith.constant 0 : index
    %111 = vector.load %arg2[%c0_35, %c0_36] : memref<32x128xf32, #tpu.memory_space<vmem>>, vector<32x128xf32>
    %cst_37 = arith.constant dense<0.000000e+00> : vector<1x128xf32>
    %112 = tpu.matmul %108, %111, %cst_37 {dimension_numbers = #tpu.dot_dimension_numbers<[1], [0], [0], [1], [0, 0, 1, 1], [], []>} : vector<1x32xf32>, vector<32x128xf32>, vector<1x128xf32> -> vector<1x128xf32>
    %113 = arith.addf %110, %112 : vector<1x128xf32>
    %114 = arith.negf %113 : vector<1x128xf32>
    %115 = math.exp %114 : vector<1x128xf32>
    %cst_38 = arith.constant 1.000000e+00 : f32
    %116 = vector.broadcast %cst_38 : f32 to vector<1x128xf32>
    %117 = arith.addf %116, %115 : vector<1x128xf32>
    %118 = arith.divf %116, %117 : vector<1x128xf32>
    %119 = math.tanh %113 : vector<1x128xf32>
    %120 = vector.extract_strided_slice %118 {offsets = [0, 0], sizes = [1, 32], strides = [1, 1]} : vector<1x128xf32> to vector<1x32xf32>
    %121 = vector.extract_strided_slice %118 {offsets = [0, 32], sizes = [1, 32], strides = [1, 1]} : vector<1x128xf32> to vector<1x32xf32>
    %122 = vector.extract_strided_slice %119 {offsets = [0, 64], sizes = [1, 32], strides = [1, 1]} : vector<1x128xf32> to vector<1x32xf32>
    %123 = vector.extract_strided_slice %118 {offsets = [0, 96], sizes = [1, 32], strides = [1, 1]} : vector<1x128xf32> to vector<1x32xf32>
    %124 = arith.mulf %121, %106 : vector<1x32xf32>
    %125 = arith.mulf %120, %122 : vector<1x32xf32>
    %126 = arith.addf %124, %125 : vector<1x32xf32>
    %127 = math.tanh %126 : vector<1x32xf32>
    %128 = arith.mulf %123, %127 : vector<1x32xf32>
    %c6_i32 = arith.constant 6 : i32
    %129 = arith.index_cast %c6_i32 : i32 to index
    %c0_39 = arith.constant 0 : index
    %130 = vector.load %arg7[%129, %c0_39] : memref<8x128xf32, #tpu.memory_space<vmem>>, vector<1x128xf32>
    %c0_40 = arith.constant 0 : index
    %c0_41 = arith.constant 0 : index
    %131 = vector.load %arg2[%c0_40, %c0_41] : memref<32x128xf32, #tpu.memory_space<vmem>>, vector<32x128xf32>
    %cst_42 = arith.constant dense<0.000000e+00> : vector<1x128xf32>
    %132 = tpu.matmul %128, %131, %cst_42 {dimension_numbers = #tpu.dot_dimension_numbers<[1], [0], [0], [1], [0, 0, 1, 1], [], []>} : vector<1x32xf32>, vector<32x128xf32>, vector<1x128xf32> -> vector<1x128xf32>
    %133 = arith.addf %130, %132 : vector<1x128xf32>
    %134 = arith.negf %133 : vector<1x128xf32>
    %135 = math.exp %134 : vector<1x128xf32>
    %cst_43 = arith.constant 1.000000e+00 : f32
    %136 = vector.broadcast %cst_43 : f32 to vector<1x128xf32>
    %137 = arith.addf %136, %135 : vector<1x128xf32>
    %138 = arith.divf %136, %137 : vector<1x128xf32>
    %139 = math.tanh %133 : vector<1x128xf32>
    %140 = vector.extract_strided_slice %138 {offsets = [0, 0], sizes = [1, 32], strides = [1, 1]} : vector<1x128xf32> to vector<1x32xf32>
    %141 = vector.extract_strided_slice %138 {offsets = [0, 32], sizes = [1, 32], strides = [1, 1]} : vector<1x128xf32> to vector<1x32xf32>
    %142 = vector.extract_strided_slice %139 {offsets = [0, 64], sizes = [1, 32], strides = [1, 1]} : vector<1x128xf32> to vector<1x32xf32>
    %143 = vector.extract_strided_slice %138 {offsets = [0, 96], sizes = [1, 32], strides = [1, 1]} : vector<1x128xf32> to vector<1x32xf32>
    %144 = arith.mulf %141, %126 : vector<1x32xf32>
    %145 = arith.mulf %140, %142 : vector<1x32xf32>
    %146 = arith.addf %144, %145 : vector<1x32xf32>
    %147 = math.tanh %146 : vector<1x32xf32>
    %148 = arith.mulf %143, %147 : vector<1x32xf32>
    %c7_i32 = arith.constant 7 : i32
    %149 = arith.index_cast %c7_i32 : i32 to index
    %c0_44 = arith.constant 0 : index
    %150 = vector.load %arg7[%149, %c0_44] : memref<8x128xf32, #tpu.memory_space<vmem>>, vector<1x128xf32>
    %c0_45 = arith.constant 0 : index
    %c0_46 = arith.constant 0 : index
    %151 = vector.load %arg2[%c0_45, %c0_46] : memref<32x128xf32, #tpu.memory_space<vmem>>, vector<32x128xf32>
    %cst_47 = arith.constant dense<0.000000e+00> : vector<1x128xf32>
    %152 = tpu.matmul %148, %151, %cst_47 {dimension_numbers = #tpu.dot_dimension_numbers<[1], [0], [0], [1], [0, 0, 1, 1], [], []>} : vector<1x32xf32>, vector<32x128xf32>, vector<1x128xf32> -> vector<1x128xf32>
    %153 = arith.addf %150, %152 : vector<1x128xf32>
    %154 = arith.negf %153 : vector<1x128xf32>
    %155 = math.exp %154 : vector<1x128xf32>
    %cst_48 = arith.constant 1.000000e+00 : f32
    %156 = vector.broadcast %cst_48 : f32 to vector<1x128xf32>
    %157 = arith.addf %156, %155 : vector<1x128xf32>
    %158 = arith.divf %156, %157 : vector<1x128xf32>
    %159 = math.tanh %153 : vector<1x128xf32>
    %160 = vector.extract_strided_slice %158 {offsets = [0, 0], sizes = [1, 32], strides = [1, 1]} : vector<1x128xf32> to vector<1x32xf32>
    %161 = vector.extract_strided_slice %158 {offsets = [0, 32], sizes = [1, 32], strides = [1, 1]} : vector<1x128xf32> to vector<1x32xf32>
    %162 = vector.extract_strided_slice %159 {offsets = [0, 64], sizes = [1, 32], strides = [1, 1]} : vector<1x128xf32> to vector<1x32xf32>
    %163 = vector.extract_strided_slice %158 {offsets = [0, 96], sizes = [1, 32], strides = [1, 1]} : vector<1x128xf32> to vector<1x32xf32>
    %164 = arith.mulf %161, %146 : vector<1x32xf32>
    %165 = arith.mulf %160, %162 : vector<1x32xf32>
    %166 = arith.addf %164, %165 : vector<1x32xf32>
    %167 = math.tanh %166 : vector<1x32xf32>
    %168 = arith.mulf %163, %167 : vector<1x32xf32>
    %c8_i32 = arith.constant 8 : i32
    %c0_49 = arith.constant 0 : index
    %c0_50 = arith.constant 0 : index
    %169 = vector.load %arg4[%c0_49, %c0_50] : memref<32x4xf32, #tpu.memory_space<vmem>>, vector<32x4xf32>
    %cst_51 = arith.constant dense<0.000000e+00> : vector<1x4xf32>
    %170 = tpu.matmul %168, %169, %cst_51 {dimension_numbers = #tpu.dot_dimension_numbers<[1], [0], [0], [1], [0, 0, 1, 1], [], []>} : vector<1x32xf32>, vector<32x4xf32>, vector<1x4xf32> -> vector<1x4xf32>
    %c0_52 = arith.constant 0 : index
    %c0_53 = arith.constant 0 : index
    %171 = vector.load %arg5[%c0_52, %c0_53] : memref<1x4xf32, #tpu.memory_space<vmem>>, vector<1x4xf32>
    %172 = arith.addf %170, %171 : vector<1x4xf32>
    %c0_54 = arith.constant 0 : index
    %c0_55 = arith.constant 0 : index
    %173 = vector.load %arg6[%c0_54, %c0_55] : memref<1x4xf32, #tpu.memory_space<vmem>>, vector<1x4xf32>
    tpu.vector_store %arg6[%c0_54, %c0_55], %172 {strides = array<i32>} : memref<1x4xf32, #tpu.memory_space<vmem>>, vector<1x4xf32>,
    return
  }
}

</mosaic_0001>

<llo_original>
// kernel: lstm_forward.1
$region0: #{lstm_forward.1}
  #allocation0 [shape = 'u32[]', space=smem, size = 0x4, offset = 0x4, fixed_abs, tag = 'smem constant byte address 0x4 - core index']
  #allocation1 [shape = 'u32[144,128]{1,0:T(1,128)}', space=vmem, size = 0x12000, scoped, tag = 'internal scratch']
  #allocation2 [shape = 'f32[8,128]{1,0:T(8,128)}', space=vmem, size = 0x1000, scoped, tag = 'scratch operand']
  %s0 = inlined_call_operand.vmem [shape: f32[8,8], index: 0, kind: input, shape index: {}]
  %s1 = inlined_call_operand.hbm [shape: f32[8,128], index: 1, kind: input, shape index: {}]
  %s2 = inlined_call_operand.vmem [shape: f32[32,128], index: 2, kind: input, shape index: {}]
  %s3 = inlined_call_operand.vmem [shape: f32[1,128], index: 3, kind: input, shape index: {}]
  %s4 = inlined_call_operand.vmem [shape: f32[32,4], index: 4, kind: input, shape index: {}]
  %s5 = inlined_call_operand.vmem [shape: f32[1,4], index: 5, kind: input, shape index: {}]
  %s6 = inlined_call_operand.hbm [shape: f32[1,4], index: 6, kind: output, shape index: {}]
  %s7 = sld [smem:[#allocation0]]
  $region38: #{lstm_forward.1} parent=0
    _
  %s9 = ssub.s32 1, %s7
  %s10 = scalar_select 0, %s9, %s7
  $region1: #{lstm_forward.1} parent=0
    #allocation3 [shape = 'u8[4096]{0}', space=vmem, size = 0x1000, scoped, tag = 'input window, operand 1, single buffered']
    #allocation4 [shape = 's32[1]{0}', space=sflag, size = 0x4, scoped, tag = 'scoped memory for lstm_forward.1']
    #allocation5 [shape = 's32[1]{0}', space=sflag, size = 0x4, scoped, tag = 'scoped memory for lstm_forward.1']
    #allocation6 [shape = 'u8[512]{0}', space=vmem, size = 0x400, scoped, tag = 'output window, operand 0, single buffered']
    %11 = vsyncpa [#allocation4], 0
    %12 = vsyncpa [#allocation5], 0
    // Predicated region
    $region2: #{lstm_forward.1} parent=1 // pred_check
      _
    $region3: #{lstm_forward.1} parent=1 // pred_check_branch
      %14 = sbr.rel (0) target = $region5
    $region4: #{lstm_forward.1} parent=1 // pred_region
      _
    $region5: #{lstm_forward.1} parent=1 // pred_fallthru
      _
    // Predicated region
    $region6: #{lstm_forward.1} parent=1 // pred_check
      _
    $region7: #{lstm_forward.1} parent=1 // pred_check_branch
      %16 = sbr.rel (0) target = $region9
    $region8: #{lstm_forward.1} parent=1 // pred_region
      %s18 = ssub.s32 128, 128
      %19 = vsyncadd [#allocation4], %s18
      %s21 = sshll.u32 [#allocation3], 4
      %s22 = int_to_ptr.vmem [resolvable:$true] %s21
      %24 = dma.hbm_to_vmem [thread:$0]  %s1, 128, %s22, [#allocation4]
    $region9: #{lstm_forward.1} parent=1 // pred_fallthru
      _
    // Predicated region
    $region10: #{lstm_forward.1} parent=1 // pred_check
      _
    $region11: #{lstm_forward.1} parent=1 // pred_check_branch
      %26 = sbr.rel (0) target = $region13
    $region12: #{lstm_forward.1} parent=1 // pred_region
      _
    $region13: #{lstm_forward.1} parent=1 // pred_fallthru
      _
    // Predicated region
    $region14: #{lstm_forward.1} parent=1 // pred_check
      _
    $region15: #{lstm_forward.1} parent=1 // pred_check_branch
      %28 = sbr.rel (0) target = $region17
    $region16: #{lstm_forward.1} parent=1 // pred_region
      _
    $region17: #{lstm_forward.1} parent=1 // pred_fallthru
      _
    // Predicated region
    $region18: #{lstm_forward.1} parent=1 // pred_check
      _
    $region19: #{lstm_forward.1} parent=1 // pred_check_branch
      %30 = sbr.rel (0) target = $region21
    $region20: #{lstm_forward.1} parent=1 // pred_region
      _
    $region21: #{lstm_forward.1} parent=1 // pred_fallthru
      _
    // Predicated region
    $region22: #{lstm_forward.1} parent=1 // pred_check
      _
    $region23: #{lstm_forward.1} parent=1 // pred_check_branch
      %32 = sbr.rel (0) target = $region25
    $region24: #{lstm_forward.1} parent=1 // pred_region
      _
    $region25: #{lstm_forward.1} parent=1 // pred_fallthru
      _
    // Predicated region
    $region26: #{lstm_forward.1} parent=1 // pred_check
      _
    $region27: #{lstm_forward.1} parent=1 // pred_check_branch
      %34 = sbr.rel (0) target = $region29
    $region28: #{lstm_forward.1} parent=1 // pred_region
      %35 = dma.done [#allocation4], 128
    $region29: #{lstm_forward.1} parent=1 // pred_fallthru
      _
    %v36 = vld [vmem:[%s0] sm:$0xff]
    %v37 = vld [vmem:[#allocation3] sm:$0xff]
    %v38 = vld [vmem:[%s3] sm:$0x1]
    %v40 = vlaneseq
    %v41 = vshrl.u32 %v40, 7
    %v42 = vsub.s32 0, %v41
    %v43 = vrot.slane %v38, %v42
    %vm45 = vcmask 64512
    %v47 = vsel %vm45, %v36, 0
    %49 = vmatprep.subr.mxu0 0.0
    %50 = vmatpush1.msra.mxu0 %v37
    %51 = vmatprep.subr.mxu0 0.0
    %52 = vmatpush1.msra.mxu0 0.0
    %53 = vmatprep.subr.mxu0 0.0
    %54 = vmatpush1.msra.mxu0 0.0
    %55 = vmatprep.subr.mxu0 0.0
    %56 = vmatpush1.msra.mxu0 0.0
    %57 = vmatprep.subr.mxu0 0.0
    %58 = vmatpush1.msra.mxu0 0.0
    %59 = vmatprep.subr.mxu0 0.0
    %60 = vmatpush1.msra.mxu0 0.0
    %61 = vmatprep.subr.mxu0 0.0
    %62 = vmatpush1.msra.mxu0 0.0
    %63 = vmatprep.subr.mxu0 0.0
    %64 = vmatpush1.msra.mxu0 0.0
    %65 = vmatprep.subr.mxu0 0.0
    %66 = vmatpush1.msra.mxu0 0.0
    %67 = vmatprep.subr.mxu0 0.0
    %68 = vmatpush1.msra.mxu0 0.0
    %69 = vmatprep.subr.mxu0 0.0
    %70 = vmatpush1.msra.mxu0 0.0
    %71 = vmatprep.subr.mxu0 0.0
    %72 = vmatpush1.msra.mxu0 0.0
    %73 = vmatprep.subr.mxu0 0.0
    %74 = vmatpush1.msra.mxu0 0.0
    %75 = vmatprep.subr.mxu0 0.0
    %76 = vmatpush1.msra.mxu0 0.0
    %77 = vmatprep.subr.mxu0 0.0
    %78 = vmatpush1.msra.mxu0 0.0
    %79 = vmatprep.subr.mxu0 0.0
    %80 = vmatpush1.msra.mxu0 0.0
    %81 = vmatprep.subr.mxu0 0.0
    %82 = vmatpush1.msra.mxu0 0.0
    %83 = vmatprep.subr.mxu0 0.0
    %84 = vmatpush1.msra.mxu0 0.0
    %85 = vmatprep.subr.mxu0 0.0
    %86 = vmatpush1.msra.mxu0 0.0
    %87 = vmatprep.subr.mxu0 0.0
    %88 = vmatpush1.msra.mxu0 0.0
    %89 = vmatprep.subr.mxu0 0.0
    %90 = vmatpush1.msra.mxu0 0.0
    %91 = vmatprep.subr.mxu0 0.0
    %92 = vmatpush1.msra.mxu0 0.0
    %93 = vmatprep.subr.mxu0 0.0
    %94 = vmatpush1.msra.mxu0 0.0
    %95 = vmatprep.subr.mxu0 0.0
    %96 = vmatpush1.msra.mxu0 0.0
    %97 = vmatprep.subr.mxu0 0.0
    %98 = vmatpush1.msra.mxu0 0.0
    %99 = vmatprep.subr.mxu0 0.0
    %100 = vmatpush1.msra.mxu0 0.0
    %101 = vmatprep.subr.mxu0 0.0
    %102 = vmatpush1.msra.mxu0 0.0
    %103 = vmatprep.subr.mxu0 0.0
    %104 = vmatpush1.msra.mxu0 0.0
    %105 = vmatprep.subr.mxu0 0.0
    %106 = vmatpush1.msra.mxu0 0.0
    %107 = vmatprep.subr.mxu0 0.0
    %108 = vmatpush1.msra.mxu0 0.0
    %109 = vmatprep.subr.mxu0 0.0
    %110 = vmatpush1.msra.mxu0 0.0
    %111 = vmatprep.subr.mxu0 0.0
    %112 = vmatpush1.msra.mxu0 0.0
    %113 = vmatprep.mubr.f32.mxu0 0.0
    %114 = vmatmul.mubr.f32.gmra.mrb[0].mxu0 %v47
    %v115 = vpop.f32.mrb[0].mxu0
    %v116 = vadd.f32 %v43, %v115
    %v117 = vpop.f32.mrb[0].mxu0
    %118 = vdwg.mxu0
    %119 = vst [vmem:[#allocation2] sm:$0xff] %v116
    %v120 = vld [vmem:[#allocation2] sm:$0x1]
    %v121 = vld [vmem:[%s2] sm:$0xff]
    %v122 = vld [vmem:[%s2 + $0x8] sm:$0xff]
    %v123 = vld [vmem:[%s2 + $0x10] sm:$0xff]
    %v124 = vld [vmem:[%s2 + $0x18] sm:$0xff]
    %vm125 = vcmask 261120
    %v127 = vsel %vm125, 0.0, 0
    %129 = vmatprep.subr.mxu0 0.0
    %130 = vmatpush1.msra.mxu0 %v121
    %131 = vmatprep.subr.mxu0 0.0
    %132 = vmatpush1.msra.mxu0 %v122
    %133 = vmatprep.subr.mxu0 0.0
    %134 = vmatpush1.msra.mxu0 %v123
    %135 = vmatprep.subr.mxu0 0.0
    %136 = vmatpush1.msra.mxu0 %v124
    %137 = vmatprep.subr.mxu0 0.0
    %138 = vmatpush1.msra.mxu0 0.0
    %139 = vmatprep.subr.mxu0 0.0
    %140 = vmatpush1.msra.mxu0 0.0
    %141 = vmatprep.subr.mxu0 0.0
    %142 = vmatpush1.msra.mxu0 0.0
    %143 = vmatprep.subr.mxu0 0.0
    %144 = vmatpush1.msra.mxu0 0.0
    %145 = vmatprep.subr.mxu0 0.0
    %146 = vmatpush1.msra.mxu0 0.0
    %147 = vmatprep.subr.mxu0 0.0
    %148 = vmatpush1.msra.mxu0 0.0
    %149 = vmatprep.subr.mxu0 0.0
    %150 = vmatpush1.msra.mxu0 0.0
    %151 = vmatprep.subr.mxu0 0.0
    %152 = vmatpush1.msra.mxu0 0.0
    %153 = vmatprep.subr.mxu0 0.0
    %154 = vmatpush1.msra.mxu0 0.0
    %155 = vmatprep.subr.mxu0 0.0
    %156 = vmatpush1.msra.mxu0 0.0
    %157 = vmatprep.subr.mxu0 0.0
    %158 = vmatpush1.msra.mxu0 0.0
    %159 = vmatprep.subr.mxu0 0.0
    %160 = vmatpush1.msra.mxu0 0.0
    %161 = vmatprep.subr.mxu0 0.0
    %162 = vmatpush1.msra.mxu0 0.0
    %163 = vmatprep.subr.mxu0 0.0
    %164 = vmatpush1.msra.mxu0 0.0
    %165 = vmatprep.subr.mxu0 0.0
    %166 = vmatpush1.msra.mxu0 0.0
    %167 = vmatprep.subr.mxu0 0.0
    %168 = vmatpush1.msra.mxu0 0.0
    %169 = vmatprep.subr.mxu0 0.0
    %170 = vmatpush1.msra.mxu0 0.0
    %171 = vmatprep.subr.mxu0 0.0
    %172 = vmatpush1.msra.mxu0 0.0
    %173 = vmatprep.subr.mxu0 0.0
    %174 = vmatpush1.msra.mxu0 0.0
    %175 = vmatprep.subr.mxu0 0.0
    %176 = vmatpush1.msra.mxu0 0.0
    %177 = vmatprep.subr.mxu0 0.0
    %178 = vmatpush1.msra.mxu0 0.0
    %179 = vmatprep.subr.mxu0 0.0
    %180 = vmatpush1.msra.mxu0 0.0
    %181 = vmatprep.subr.mxu0 0.0
    %182 = vmatpush1.msra.mxu0 0.0
    %183 = vmatprep.subr.mxu0 0.0
    %184 = vmatpush1.msra.mxu0 0.0
    %185 = vmatprep.subr.mxu0 0.0
    %186 = vmatpush1.msra.mxu0 0.0
    %187 = vmatprep.subr.mxu0 0.0
    %188 = vmatpush1.msra.mxu0 0.0
    %189 = vmatprep.subr.mxu0 0.0
    %190 = vmatpush1.msra.mxu0 0.0
    %191 = vmatprep.subr.mxu0 0.0
    %192 = vmatpush1.msra.mxu0 0.0
    %193 = vmatprep.mubr.f32.mxu0 0.0
    %194 = vmatmul.mubr.f32.gmra.mrb[0].mxu0 %v127
    %v195 = vpop.f32.mrb[0].mxu0
    %v196 = vadd.f32 0.0, %v195
    %v197 = vpop.f32.mrb[0].mxu0
    %198 = vdwg.mxu0
    %v199 = vadd.f32 %v120, %v196
    %v200 = vxor.u32 %v199, 2147483648
    %v201 = vmul.f32 %v200, 1.442695
    %v202 = vpow.pop %v201
    %v203 = vadd.f32 %v202, 1.0
    %v204 = vrcp.pop %v203
    %v205 = vmul.f32 1.0, %v204
    %v206 = vtanh.pop %v199
    %v207 = vmul.f32 %v205, 0.0
    %209 = vrot.lane.b32.xlu0 %v206, 64
    %v210 = vpop.permute.xlu0 %209
    %v212 = vmul.f32 %v205, %v210
    %214 = vrot.lane.b32.xlu0 %v212, 32
    %v215 = vpop.permute.xlu0 %214
    %v217 = vadd.f32 %v207, %v215
    %v218 = vtanh.pop %v217
    %220 = vrot.lane.b32.xlu0 %v218, 64
    %v221 = vpop.permute.xlu0 %220
    %v223 = vmul.f32 %v205, %v221
    %v224 = vld [vmem:[#allocation2 + $0x1] sm:$0x1]
    %226 = vrot.lane.b32.xlu0 %v223, 32
    %v227 = vpop.permute.xlu0 %226
    %v228 = vsel %vm125, %v227, 0
    %230 = vmatprep.subr.mxu0 0.0
    %231 = vmatpush1.msra.mxu0 %v121
    %232 = vmatprep.subr.mxu0 0.0
    %233 = vmatpush1.msra.mxu0 %v122
    %234 = vmatprep.subr.mxu0 0.0
    %235 = vmatpush1.msra.mxu0 %v123
    %236 = vmatprep.subr.mxu0 0.0
    %237 = vmatpush1.msra.mxu0 %v124
    %238 = vmatprep.subr.mxu0 0.0
    %239 = vmatpush1.msra.mxu0 0.0
    %240 = vmatprep.subr.mxu0 0.0
    %241 = vmatpush1.msra.mxu0 0.0
    %242 = vmatprep.subr.mxu0 0.0
    %243 = vmatpush1.msra.mxu0 0.0
    %244 = vmatprep.subr.mxu0 0.0
    %245 = vmatpush1.msra.mxu0 0.0
    %246 = vmatprep.subr.mxu0 0.0
    %247 = vmatpush1.msra.mxu0 0.0
    %248 = vmatprep.subr.mxu0 0.0
    %249 = vmatpush1.msra.mxu0 0.0
    %250 = vmatprep.subr.mxu0 0.0
    %251 = vmatpush1.msra.mxu0 0.0
    %252 = vmatprep.subr.mxu0 0.0
    %253 = vmatpush1.msra.mxu0 0.0
    %254 = vmatprep.subr.mxu0 0.0
    %255 = vmatpush1.msra.mxu0 0.0
    %256 = vmatprep.subr.mxu0 0.0
    %257 = vmatpush1.msra.mxu0 0.0
    %258 = vmatprep.subr.mxu0 0.0
    %259 = vmatpush1.msra.mxu0 0.0
    %260 = vmatprep.subr.mxu0 0.0
    %261 = vmatpush1.msra.mxu0 0.0
    %262 = vmatprep.subr.mxu0 0.0
    %263 = vmatpush1.msra.mxu0 0.0
    %264 = vmatprep.subr.mxu0 0.0
    %265 = vmatpush1.msra.mxu0 0.0
    %266 = vmatprep.subr.mxu0 0.0
    %267 = vmatpush1.msra.mxu0 0.0
    %268 = vmatprep.subr.mxu0 0.0
    %269 = vmatpush1.msra.mxu0 0.0
    %270 = vmatprep.subr.mxu0 0.0
    %271 = vmatpush1.msra.mxu0 0.0
    %272 = vmatprep.subr.mxu0 0.0
    %273 = vmatpush1.msra.mxu0 0.0
    %274 = vmatprep.subr.mxu0 0.0
    %275 = vmatpush1.msra.mxu0 0.0
    %276 = vmatprep.subr.mxu0 0.0
    %277 = vmatpush1.msra.mxu0 0.0
    %278 = vmatprep.subr.mxu0 0.0
    %279 = vmatpush1.msra.mxu0 0.0
    %280 = vmatprep.subr.mxu0 0.0
    %281 = vmatpush1.msra.mxu0 0.0
    %282 = vmatprep.subr.mxu0 0.0
    %283 = vmatpush1.msra.mxu0 0.0
    %284 = vmatprep.subr.mxu0 0.0
    %285 = vmatpush1.msra.mxu0 0.0
    %286 = vmatprep.subr.mxu0 0.0
    %287 = vmatpush1.msra.mxu0 0.0
    %288 = vmatprep.subr.mxu0 0.0
    %289 = vmatpush1.msra.mxu0 0.0
    %290 = vmatprep.subr.mxu0 0.0
    %291 = vmatpush1.msra.mxu0 0.0
    %292 = vmatprep.subr.mxu0 0.0
    %293 = vmatpush1.msra.mxu0 0.0
    %294 = vmatprep.mubr.f32.mxu0 0.0
    %295 = vmatmul.mubr.f32.gmra.mrb[0].mxu0 %v228
    %v296 = vpop.f32.mrb[0].mxu0
    %v297 = vadd.f32 0.0, %v296
    %v298 = vpop.f32.mrb[0].mxu0
    %299 = vdwg.mxu0
    %v300 = vadd.f32 %v224, %v297
    %v301 = vxor.u32 %v300, 2147483648
    %v302 = vmul.f32 %v301, 1.442695
    %v303 = vpow.pop %v302
    %v304 = vadd.f32 %v303, 1.0
    %v305 = vrcp.pop %v304
    %v306 = vmul.f32 1.0, %v305
    %v307 = vtanh.pop %v300
    %v308 = vmul.f32 %v306, %v217
    %310 = vrot.lane.b32.xlu0 %v307, 64
    %v311 = vpop.permute.xlu0 %310
    %v313 = vmul.f32 %v306, %v311
    %315 = vrot.lane.b32.xlu0 %v313, 32
    %v316 = vpop.permute.xlu0 %315
    %v318 = vadd.f32 %v308, %v316
    %v319 = vtanh.pop %v318
    %321 = vrot.lane.b32.xlu0 %v319, 64
    %v322 = vpop.permute.xlu0 %321
    %v324 = vmul.f32 %v306, %v322
    %v325 = vld [vmem:[#allocation2 + $0x2] sm:$0x1]
    %327 = vrot.lane.b32.xlu0 %v324, 32
    %v328 = vpop.permute.xlu0 %327
    %v329 = vsel %vm125, %v328, 0
    %331 = vmatprep.subr.mxu0 0.0
    %332 = vmatpush1.msra.mxu0 %v121
    %333 = vmatprep.subr.mxu0 0.0
    %334 = vmatpush1.msra.mxu0 %v122
    %335 = vmatprep.subr.mxu0 0.0
    %336 = vmatpush1.msra.mxu0 %v123
    %337 = vmatprep.subr.mxu0 0.0
    %338 = vmatpush1.msra.mxu0 %v124
    %339 = vmatprep.subr.mxu0 0.0
    %340 = vmatpush1.msra.mxu0 0.0
    %341 = vmatprep.subr.mxu0 0.0
    %342 = vmatpush1.msra.mxu0 0.0
    %343 = vmatprep.subr.mxu0 0.0
    %344 = vmatpush1.msra.mxu0 0.0
    %345 = vmatprep.subr.mxu0 0.0
    %346 = vmatpush1.msra.mxu0 0.0
    %347 = vmatprep.subr.mxu0 0.0
    %348 = vmatpush1.msra.mxu0 0.0
    %349 = vmatprep.subr.mxu0 0.0
    %350 = vmatpush1.msra.mxu0 0.0
    %351 = vmatprep.subr.mxu0 0.0
    %352 = vmatpush1.msra.mxu0 0.0
    %353 = vmatprep.subr.mxu0 0.0
    %354 = vmatpush1.msra.mxu0 0.0
    %355 = vmatprep.subr.mxu0 0.0
    %356 = vmatpush1.msra.mxu0 0.0
    %357 = vmatprep.subr.mxu0 0.0
    %358 = vmatpush1.msra.mxu0 0.0
    %359 = vmatprep.subr.mxu0 0.0
    %360 = vmatpush1.msra.mxu0 0.0
    %361 = vmatprep.subr.mxu0 0.0
    %362 = vmatpush1.msra.mxu0 0.0
    %363 = vmatprep.subr.mxu0 0.0
    %364 = vmatpush1.msra.mxu0 0.0
    %365 = vmatprep.subr.mxu0 0.0
    %366 = vmatpush1.msra.mxu0 0.0
    %367 = vmatprep.subr.mxu0 0.0
    %368 = vmatpush1.msra.mxu0 0.0
    %369 = vmatprep.subr.mxu0 0.0
    %370 = vmatpush1.msra.mxu0 0.0
    %371 = vmatprep.subr.mxu0 0.0
    %372 = vmatpush1.msra.mxu0 0.0
    %373 = vmatprep.subr.mxu0 0.0
    %374 = vmatpush1.msra.mxu0 0.0
    %375 = vmatprep.subr.mxu0 0.0
    %376 = vmatpush1.msra.mxu0 0.0
    %377 = vmatprep.subr.mxu0 0.0
    %378 = vmatpush1.msra.mxu0 0.0
    %379 = vmatprep.subr.mxu0 0.0
    %380 = vmatpush1.msra.mxu0 0.0
    %381 = vmatprep.subr.mxu0 0.0
    %382 = vmatpush1.msra.mxu0 0.0
    %383 = vmatprep.subr.mxu0 0.0
    %384 = vmatpush1.msra.mxu0 0.0
    %385 = vmatprep.subr.mxu0 0.0
    %386 = vmatpush1.msra.mxu0 0.0
    %387 = vmatprep.subr.mxu0 0.0
    %388 = vmatpush1.msra.mxu0 0.0
    %389 = vmatprep.subr.mxu0 0.0
    %390 = vmatpush1.msra.mxu0 0.0
    %391 = vmatprep.subr.mxu0 0.0
    %392 = vmatpush1.msra.mxu0 0.0
    %393 = vmatprep.subr.mxu0 0.0
    %394 = vmatpush1.msra.mxu0 0.0
    %395 = vmatprep.mubr.f32.mxu0 0.0
    %396 = vmatmul.mubr.f32.gmra.mrb[0].mxu0 %v329
    %v397 = vpop.f32.mrb[0].mxu0
    %v398 = vadd.f32 0.0, %v397
    %v399 = vpop.f32.mrb[0].mxu0
    %400 = vdwg.mxu0
    %v401 = vadd.f32 %v325, %v398
    %v402 = vxor.u32 %v401, 2147483648
    %v403 = vmul.f32 %v402, 1.442695
    %v404 = vpow.pop %v403
    %v405 = vadd.f32 %v404, 1.0
    %v406 = vrcp.pop %v405
    %v407 = vmul.f32 1.0, %v406
    %v408 = vtanh.pop %v401
    %v409 = vmul.f32 %v407, %v318
    %411 = vrot.lane.b32.xlu0 %v408, 64
    %v412 = vpop.permute.xlu0 %411
    %v414 = vmul.f32 %v407, %v412
    %416 = vrot.lane.b32.xlu0 %v414, 32
    %v417 = vpop.permute.xlu0 %416
    %v419 = vadd.f32 %v409, %v417
    %v420 = vtanh.pop %v419
    %422 = vrot.lane.b32.xlu0 %v420, 64
    %v423 = vpop.permute.xlu0 %422
    %v425 = vmul.f32 %v407, %v423
    %v426 = vld [vmem:[#allocation2 + $0x3] sm:$0x1]
    %428 = vrot.lane.b32.xlu0 %v425, 32
    %v429 = vpop.permute.xlu0 %428
    %v430 = vsel %vm125, %v429, 0
    %432 = vmatprep.subr.mxu0 0.0
    %433 = vmatpush1.msra.mxu0 %v121
    %434 = vmatprep.subr.mxu0 0.0
    %435 = vmatpush1.msra.mxu0 %v122
    %436 = vmatprep.subr.mxu0 0.0
    %437 = vmatpush1.msra.mxu0 %v123
    %438 = vmatprep.subr.mxu0 0.0
    %439 = vmatpush1.msra.mxu0 %v124
    %440 = vmatprep.subr.mxu0 0.0
    %441 = vmatpush1.msra.mxu0 0.0
    %442 = vmatprep.subr.mxu0 0.0
    %443 = vmatpush1.msra.mxu0 0.0
    %444 = vmatprep.subr.mxu0 0.0
    %445 = vmatpush1.msra.mxu0 0.0
    %446 = vmatprep.subr.mxu0 0.0
    %447 = vmatpush1.msra.mxu0 0.0
    %448 = vmatprep.subr.mxu0 0.0
    %449 = vmatpush1.msra.mxu0 0.0
    %450 = vmatprep.subr.mxu0 0.0
    %451 = vmatpush1.msra.mxu0 0.0
    %452 = vmatprep.subr.mxu0 0.0
    %453 = vmatpush1.msra.mxu0 0.0
    %454 = vmatprep.subr.mxu0 0.0
    %455 = vmatpush1.msra.mxu0 0.0
    %456 = vmatprep.subr.mxu0 0.0
    %457 = vmatpush1.msra.mxu0 0.0
    %458 = vmatprep.subr.mxu0 0.0
    %459 = vmatpush1.msra.mxu0 0.0
    %460 = vmatprep.subr.mxu0 0.0
    %461 = vmatpush1.msra.mxu0 0.0
    %462 = vmatprep.subr.mxu0 0.0
    %463 = vmatpush1.msra.mxu0 0.0
    %464 = vmatprep.subr.mxu0 0.0
    %465 = vmatpush1.msra.mxu0 0.0
    %466 = vmatprep.subr.mxu0 0.0
    %467 = vmatpush1.msra.mxu0 0.0
    %468 = vmatprep.subr.mxu0 0.0
    %469 = vmatpush1.msra.mxu0 0.0
    %470 = vmatprep.subr.mxu0 0.0
    %471 = vmatpush1.msra.mxu0 0.0
    %472 = vmatprep.subr.mxu0 0.0
    %473 = vmatpush1.msra.mxu0 0.0
    %474 = vmatprep.subr.mxu0 0.0
    %475 = vmatpush1.msra.mxu0 0.0
    %476 = vmatprep.subr.mxu0 0.0
    %477 = vmatpush1.msra.mxu0 0.0
    %478 = vmatprep.subr.mxu0 0.0
    %479 = vmatpush1.msra.mxu0 0.0
    %480 = vmatprep.subr.mxu0 0.0
    %481 = vmatpush1.msra.mxu0 0.0
    %482 = vmatprep.subr.mxu0 0.0
    %483 = vmatpush1.msra.mxu0 0.0
    %484 = vmatprep.subr.mxu0 0.0
    %485 = vmatpush1.msra.mxu0 0.0
    %486 = vmatprep.subr.mxu0 0.0
    %487 = vmatpush1.msra.mxu0 0.0
    %488 = vmatprep.subr.mxu0 0.0
    %489 = vmatpush1.msra.mxu0 0.0
    %490 = vmatprep.subr.mxu0 0.0
    %491 = vmatpush1.msra.mxu0 0.0
    %492 = vmatprep.subr.mxu0 0.0
    %493 = vmatpush1.msra.mxu0 0.0
    %494 = vmatprep.subr.mxu0 0.0
    %495 = vmatpush1.msra.mxu0 0.0
    %496 = vmatprep.mubr.f32.mxu0 0.0
    %497 = vmatmul.mubr.f32.gmra.mrb[0].mxu0 %v430
    %v498 = vpop.f32.mrb[0].mxu0
    %v499 = vadd.f32 0.0, %v498
    %v500 = vpop.f32.mrb[0].mxu0
    %501 = vdwg.mxu0
    %v502 = vadd.f32 %v426, %v499
    %v503 = vxor.u32 %v502, 2147483648
    %v504 = vmul.f32 %v503, 1.442695
    %v505 = vpow.pop %v504
    %v506 = vadd.f32 %v505, 1.0
    %v507 = vrcp.pop %v506
    %v508 = vmul.f32 1.0, %v507
    %v509 = vtanh.pop %v502
    %v510 = vmul.f32 %v508, %v419
    %512 = vrot.lane.b32.xlu0 %v509, 64
    %v513 = vpop.permute.xlu0 %512
    %v515 = vmul.f32 %v508, %v513
    %517 = vrot.lane.b32.xlu0 %v515, 32
    %v518 = vpop.permute.xlu0 %517
    %v520 = vadd.f32 %v510, %v518
    %v521 = vtanh.pop %v520
    %523 = vrot.lane.b32.xlu0 %v521, 64
    %v524 = vpop.permute.xlu0 %523
    %v526 = vmul.f32 %v508, %v524
    %v527 = vld [vmem:[#allocation2 + $0x4] sm:$0x1]
    %529 = vrot.lane.b32.xlu0 %v526, 32
    %v530 = vpop.permute.xlu0 %529
    %v531 = vsel %vm125, %v530, 0
    %533 = vmatprep.subr.mxu0 0.0
    %534 = vmatpush1.msra.mxu0 %v121
    %535 = vmatprep.subr.mxu0 0.0
    %536 = vmatpush1.msra.mxu0 %v122
    %537 = vmatprep.subr.mxu0 0.0
    %538 = vmatpush1.msra.mxu0 %v123
    %539 = vmatprep.subr.mxu0 0.0
    %540 = vmatpush1.msra.mxu0 %v124
    %541 = vmatprep.subr.mxu0 0.0
    %542 = vmatpush1.msra.mxu0 0.0
    %543 = vmatprep.subr.mxu0 0.0
    %544 = vmatpush1.msra.mxu0 0.0
    %545 = vmatprep.subr.mxu0 0.0
    %546 = vmatpush1.msra.mxu0 0.0
    %547 = vmatprep.subr.mxu0 0.0
    %548 = vmatpush1.msra.mxu0 0.0
    %549 = vmatprep.subr.mxu0 0.0
    %550 = vmatpush1.msra.mxu0 0.0
    %551 = vmatprep.subr.mxu0 0.0
    %552 = vmatpush1.msra.mxu0 0.0
    %553 = vmatprep.subr.mxu0 0.0
    %554 = vmatpush1.msra.mxu0 0.0
    %555 = vmatprep.subr.mxu0 0.0
    %556 = vmatpush1.msra.mxu0 0.0
    %557 = vmatprep.subr.mxu0 0.0
    %558 = vmatpush1.msra.mxu0 0.0
    %559 = vmatprep.subr.mxu0 0.0
    %560 = vmatpush1.msra.mxu0 0.0
    %561 = vmatprep.subr.mxu0 0.0
    %562 = vmatpush1.msra.mxu0 0.0
    %563 = vmatprep.subr.mxu0 0.0
    %564 = vmatpush1.msra.mxu0 0.0
    %565 = vmatprep.subr.mxu0 0.0
    %566 = vmatpush1.msra.mxu0 0.0
    %567 = vmatprep.subr.mxu0 0.0
    %568 = vmatpush1.msra.mxu0 0.0
    %569 = vmatprep.subr.mxu0 0.0
    %570 = vmatpush1.msra.mxu0 0.0
    %571 = vmatprep.subr.mxu0 0.0
    %572 = vmatpush1.msra.mxu0 0.0
    %573 = vmatprep.subr.mxu0 0.0
    %574 = vmatpush1.msra.mxu0 0.0
    %575 = vmatprep.subr.mxu0 0.0
    %576 = vmatpush1.msra.mxu0 0.0
    %577 = vmatprep.subr.mxu0 0.0
    %578 = vmatpush1.msra.mxu0 0.0
    %579 = vmatprep.subr.mxu0 0.0
    %580 = vmatpush1.msra.mxu0 0.0
    %581 = vmatprep.subr.mxu0 0.0
    %582 = vmatpush1.msra.mxu0 0.0
    %583 = vmatprep.subr.mxu0 0.0
    %584 = vmatpush1.msra.mxu0 0.0
    %585 = vmatprep.subr.mxu0 0.0
    %586 = vmatpush1.msra.mxu0 0.0
    %587 = vmatprep.subr.mxu0 0.0
    %588 = vmatpush1.msra.mxu0 0.0
    %589 = vmatprep.subr.mxu0 0.0
    %590 = vmatpush1.msra.mxu0 0.0
    %591 = vmatprep.subr.mxu0 0.0
    %592 = vmatpush1.msra.mxu0 0.0
    %593 = vmatprep.subr.mxu0 0.0
    %594 = vmatpush1.msra.mxu0 0.0
    %595 = vmatprep.subr.mxu0 0.0
    %596 = vmatpush1.msra.mxu0 0.0
    %597 = vmatprep.mubr.f32.mxu0 0.0
    %598 = vmatmul.mubr.f32.gmra.mrb[0].mxu0 %v531
    %v599 = vpop.f32.mrb[0].mxu0
    %v600 = vadd.f32 0.0, %v599
    %v601 = vpop.f32.mrb[0].mxu0
    %602 = vdwg.mxu0
    %v603 = vadd.f32 %v527, %v600
    %v604 = vxor.u32 %v603, 2147483648
    %v605 = vmul.f32 %v604, 1.442695
    %v606 = vpow.pop %v605
    %v607 = vadd.f32 %v606, 1.0
    %v608 = vrcp.pop %v607
    %v609 = vmul.f32 1.0, %v608
    %v610 = vtanh.pop %v603
    %v611 = vmul.f32 %v609, %v520
    %613 = vrot.lane.b32.xlu0 %v610, 64
    %v614 = vpop.permute.xlu0 %613
    %v616 = vmul.f32 %v609, %v614
    %618 = vrot.lane.b32.xlu0 %v616, 32
    %v619 = vpop.permute.xlu0 %618
    %v621 = vadd.f32 %v611, %v619
    %v622 = vtanh.pop %v621
    %624 = vrot.lane.b32.xlu0 %v622, 64
    %v625 = vpop.permute.xlu0 %624
    %v627 = vmul.f32 %v609, %v625
    %v628 = vld [vmem:[#allocation2 + $0x5] sm:$0x1]
    %630 = vrot.lane.b32.xlu0 %v627, 32
    %v631 = vpop.permute.xlu0 %630
    %v632 = vsel %vm125, %v631, 0
    %634 = vmatprep.subr.mxu0 0.0
    %635 = vmatpush1.msra.mxu0 %v121
    %636 = vmatprep.subr.mxu0 0.0
    %637 = vmatpush1.msra.mxu0 %v122
    %638 = vmatprep.subr.mxu0 0.0
    %639 = vmatpush1.msra.mxu0 %v123
    %640 = vmatprep.subr.mxu0 0.0
    %641 = vmatpush1.msra.mxu0 %v124
    %642 = vmatprep.subr.mxu0 0.0
    %643 = vmatpush1.msra.mxu0 0.0
    %644 = vmatprep.subr.mxu0 0.0
    %645 = vmatpush1.msra.mxu0 0.0
    %646 = vmatprep.subr.mxu0 0.0
    %647 = vmatpush1.msra.mxu0 0.0
    %648 = vmatprep.subr.mxu0 0.0
    %649 = vmatpush1.msra.mxu0 0.0
    %650 = vmatprep.subr.mxu0 0.0
    %651 = vmatpush1.msra.mxu0 0.0
    %652 = vmatprep.subr.mxu0 0.0
    %653 = vmatpush1.msra.mxu0 0.0
    %654 = vmatprep.subr.mxu0 0.0
    %655 = vmatpush1.msra.mxu0 0.0
    %656 = vmatprep.subr.mxu0 0.0
    %657 = vmatpush1.msra.mxu0 0.0
    %658 = vmatprep.subr.mxu0 0.0
    %659 = vmatpush1.msra.mxu0 0.0
    %660 = vmatprep.subr.mxu0 0.0
    %661 = vmatpush1.msra.mxu0 0.0
    %662 = vmatprep.subr.mxu0 0.0
    %663 = vmatpush1.msra.mxu0 0.0
    %664 = vmatprep.subr.mxu0 0.0
    %665 = vmatpush1.msra.mxu0 0.0
    %666 = vmatprep.subr.mxu0 0.0
    %667 = vmatpush1.msra.mxu0 0.0
    %668 = vmatprep.subr.mxu0 0.0
    %669 = vmatpush1.msra.mxu0 0.0
    %670 = vmatprep.subr.mxu0 0.0
    %671 = vmatpush1.msra.mxu0 0.0
    %672 = vmatprep.subr.mxu0 0.0
    %673 = vmatpush1.msra.mxu0 0.0
    %674 = vmatprep.subr.mxu0 0.0
    %675 = vmatpush1.msra.mxu0 0.0
    %676 = vmatprep.subr.mxu0 0.0
    %677 = vmatpush1.msra.mxu0 0.0
    %678 = vmatprep.subr.mxu0 0.0
    %679 = vmatpush1.msra.mxu0 0.0
    %680 = vmatprep.subr.mxu0 0.0
    %681 = vmatpush1.msra.mxu0 0.0
    %682 = vmatprep.subr.mxu0 0.0
    %683 = vmatpush1.msra.mxu0 0.0
    %684 = vmatprep.subr.mxu0 0.0
    %685 = vmatpush1.msra.mxu0 0.0
    %686 = vmatprep.subr.mxu0 0.0
    %687 = vmatpush1.msra.mxu0 0.0
    %688 = vmatprep.subr.mxu0 0.0
    %689 = vmatpush1.msra.mxu0 0.0
    %690 = vmatprep.subr.mxu0 0.0
    %691 = vmatpush1.msra.mxu0 0.0
    %692 = vmatprep.subr.mxu0 0.0
    %693 = vmatpush1.msra.mxu0 0.0
    %694 = vmatprep.subr.mxu0 0.0
    %695 = vmatpush1.msra.mxu0 0.0
    %696 = vmatprep.subr.mxu0 0.0
    %697 = vmatpush1.msra.mxu0 0.0
    %698 = vmatprep.mubr.f32.mxu0 0.0
    %699 = vmatmul.mubr.f32.gmra.mrb[0].mxu0 %v632
    %v700 = vpop.f32.mrb[0].mxu0
    %v701 = vadd.f32 0.0, %v700
    %v702 = vpop.f32.mrb[0].mxu0
    %703 = vdwg.mxu0
    %v704 = vadd.f32 %v628, %v701
    %v705 = vxor.u32 %v704, 2147483648
    %v706 = vmul.f32 %v705, 1.442695
    %v707 = vpow.pop %v706
    %v708 = vadd.f32 %v707, 1.0
    %v709 = vrcp.pop %v708
    %v710 = vmul.f32 1.0, %v709
    %v711 = vtanh.pop %v704
    %v712 = vmul.f32 %v710, %v621
    %714 = vrot.lane.b32.xlu0 %v711, 64
    %v715 = vpop.permute.xlu0 %714
    %v717 = vmul.f32 %v710, %v715
    %719 = vrot.lane.b32.xlu0 %v717, 32
    %v720 = vpop.permute.xlu0 %719
    %v722 = vadd.f32 %v712, %v720
    %v723 = vtanh.pop %v722
    %725 = vrot.lane.b32.xlu0 %v723, 64
    %v726 = vpop.permute.xlu0 %725
    %v728 = vmul.f32 %v710, %v726
    %v729 = vld [vmem:[#allocation2 + $0x6] sm:$0x1]
    %731 = vrot.lane.b32.xlu0 %v728, 32
    %v732 = vpop.permute.xlu0 %731
    %v733 = vsel %vm125, %v732, 0
    %735 = vmatprep.subr.mxu0 0.0
    %736 = vmatpush1.msra.mxu0 %v121
    %737 = vmatprep.subr.mxu0 0.0
    %738 = vmatpush1.msra.mxu0 %v122
    %739 = vmatprep.subr.mxu0 0.0
    %740 = vmatpush1.msra.mxu0 %v123
    %741 = vmatprep.subr.mxu0 0.0
    %742 = vmatpush1.msra.mxu0 %v124
    %743 = vmatprep.subr.mxu0 0.0
    %744 = vmatpush1.msra.mxu0 0.0
    %745 = vmatprep.subr.mxu0 0.0
    %746 = vmatpush1.msra.mxu0 0.0
    %747 = vmatprep.subr.mxu0 0.0
    %748 = vmatpush1.msra.mxu0 0.0
    %749 = vmatprep.subr.mxu0 0.0
    %750 = vmatpush1.msra.mxu0 0.0
    %751 = vmatprep.subr.mxu0 0.0
    %752 = vmatpush1.msra.mxu0 0.0
    %753 = vmatprep.subr.mxu0 0.0
    %754 = vmatpush1.msra.mxu0 0.0
    %755 = vmatprep.subr.mxu0 0.0
    %756 = vmatpush1.msra.mxu0 0.0
    %757 = vmatprep.subr.mxu0 0.0
    %758 = vmatpush1.msra.mxu0 0.0
    %759 = vmatprep.subr.mxu0 0.0
    %760 = vmatpush1.msra.mxu0 0.0
    %761 = vmatprep.subr.mxu0 0.0
    %762 = vmatpush1.msra.mxu0 0.0
    %763 = vmatprep.subr.mxu0 0.0
    %764 = vmatpush1.msra.mxu0 0.0
    %765 = vmatprep.subr.mxu0 0.0
    %766 = vmatpush1.msra.mxu0 0.0
    %767 = vmatprep.subr.mxu0 0.0
    %768 = vmatpush1.msra.mxu0 0.0
    %769 = vmatprep.subr.mxu0 0.0
    %770 = vmatpush1.msra.mxu0 0.0
    %771 = vmatprep.subr.mxu0 0.0
    %772 = vmatpush1.msra.mxu0 0.0
    %773 = vmatprep.subr.mxu0 0.0
    %774 = vmatpush1.msra.mxu0 0.0
    %775 = vmatprep.subr.mxu0 0.0
    %776 = vmatpush1.msra.mxu0 0.0
    %777 = vmatprep.subr.mxu0 0.0
    %778 = vmatpush1.msra.mxu0 0.0
    %779 = vmatprep.subr.mxu0 0.0
    %780 = vmatpush1.msra.mxu0 0.0
    %781 = vmatprep.subr.mxu0 0.0
    %782 = vmatpush1.msra.mxu0 0.0
    %783 = vmatprep.subr.mxu0 0.0
    %784 = vmatpush1.msra.mxu0 0.0
    %785 = vmatprep.subr.mxu0 0.0
    %786 = vmatpush1.msra.mxu0 0.0
    %787 = vmatprep.subr.mxu0 0.0
    %788 = vmatpush1.msra.mxu0 0.0
    %789 = vmatprep.subr.mxu0 0.0
    %790 = vmatpush1.msra.mxu0 0.0
    %791 = vmatprep.subr.mxu0 0.0
    %792 = vmatpush1.msra.mxu0 0.0
    %793 = vmatprep.subr.mxu0 0.0
    %794 = vmatpush1.msra.mxu0 0.0
    %795 = vmatprep.subr.mxu0 0.0
    %796 = vmatpush1.msra.mxu0 0.0
    %797 = vmatprep.subr.mxu0 0.0
    %798 = vmatpush1.msra.mxu0 0.0
    %799 = vmatprep.mubr.f32.mxu0 0.0
    %800 = vmatmul.mubr.f32.gmra.mrb[0].mxu0 %v733
    %v801 = vpop.f32.mrb[0].mxu0
    %v802 = vadd.f32 0.0, %v801
    %v803 = vpop.f32.mrb[0].mxu0
    %804 = vdwg.mxu0
    %v805 = vadd.f32 %v729, %v802
    %v806 = vxor.u32 %v805, 2147483648
    %v807 = vmul.f32 %v806, 1.442695
    %v808 = vpow.pop %v807
    %v809 = vadd.f32 %v808, 1.0
    %v810 = vrcp.pop %v809
    %v811 = vmul.f32 1.0, %v810
    %v812 = vtanh.pop %v805
    %v813 = vmul.f32 %v811, %v722
    %815 = vrot.lane.b32.xlu0 %v812, 64
    %v816 = vpop.permute.xlu0 %815
    %v818 = vmul.f32 %v811, %v816
    %820 = vrot.lane.b32.xlu0 %v818, 32
    %v821 = vpop.permute.xlu0 %820
    %v823 = vadd.f32 %v813, %v821
    %v824 = vtanh.pop %v823
    %826 = vrot.lane.b32.xlu0 %v824, 64
    %v827 = vpop.permute.xlu0 %826
    %v829 = vmul.f32 %v811, %v827
    %v830 = vld [vmem:[#allocation2 + $0x7] sm:$0x1]
    %832 = vrot.lane.b32.xlu0 %v829, 32
    %v833 = vpop.permute.xlu0 %832
    %v834 = vsel %vm125, %v833, 0
    %836 = vmatprep.subr.mxu0 0.0
    %837 = vmatpush1.msra.mxu0 %v121
    %838 = vmatprep.subr.mxu0 0.0
    %839 = vmatpush1.msra.mxu0 %v122
    %840 = vmatprep.subr.mxu0 0.0
    %841 = vmatpush1.msra.mxu0 %v123
    %842 = vmatprep.subr.mxu0 0.0
    %843 = vmatpush1.msra.mxu0 %v124
    %844 = vmatprep.subr.mxu0 0.0
    %845 = vmatpush1.msra.mxu0 0.0
    %846 = vmatprep.subr.mxu0 0.0
    %847 = vmatpush1.msra.mxu0 0.0
    %848 = vmatprep.subr.mxu0 0.0
    %849 = vmatpush1.msra.mxu0 0.0
    %850 = vmatprep.subr.mxu0 0.0
    %851 = vmatpush1.msra.mxu0 0.0
    %852 = vmatprep.subr.mxu0 0.0
    %853 = vmatpush1.msra.mxu0 0.0
    %854 = vmatprep.subr.mxu0 0.0
    %855 = vmatpush1.msra.mxu0 0.0
    %856 = vmatprep.subr.mxu0 0.0
    %857 = vmatpush1.msra.mxu0 0.0
    %858 = vmatprep.subr.mxu0 0.0
    %859 = vmatpush1.msra.mxu0 0.0
    %860 = vmatprep.subr.mxu0 0.0
    %861 = vmatpush1.msra.mxu0 0.0
    %862 = vmatprep.subr.mxu0 0.0
    %863 = vmatpush1.msra.mxu0 0.0
    %864 = vmatprep.subr.mxu0 0.0
    %865 = vmatpush1.msra.mxu0 0.0
    %866 = vmatprep.subr.mxu0 0.0
    %867 = vmatpush1.msra.mxu0 0.0
    %868 = vmatprep.subr.mxu0 0.0
    %869 = vmatpush1.msra.mxu0 0.0
    %870 = vmatprep.subr.mxu0 0.0
    %871 = vmatpush1.msra.mxu0 0.0
    %872 = vmatprep.subr.mxu0 0.0
    %873 = vmatpush1.msra.mxu0 0.0
    %874 = vmatprep.subr.mxu0 0.0
    %875 = vmatpush1.msra.mxu0 0.0
    %876 = vmatprep.subr.mxu0 0.0
    %877 = vmatpush1.msra.mxu0 0.0
    %878 = vmatprep.subr.mxu0 0.0
    %879 = vmatpush1.msra.mxu0 0.0
    %880 = vmatprep.subr.mxu0 0.0
    %881 = vmatpush1.msra.mxu0 0.0
    %882 = vmatprep.subr.mxu0 0.0
    %883 = vmatpush1.msra.mxu0 0.0
    %884 = vmatprep.subr.mxu0 0.0
    %885 = vmatpush1.msra.mxu0 0.0
    %886 = vmatprep.subr.mxu0 0.0
    %887 = vmatpush1.msra.mxu0 0.0
    %888 = vmatprep.subr.mxu0 0.0
    %889 = vmatpush1.msra.mxu0 0.0
    %890 = vmatprep.subr.mxu0 0.0
    %891 = vmatpush1.msra.mxu0 0.0
    %892 = vmatprep.subr.mxu0 0.0
    %893 = vmatpush1.msra.mxu0 0.0
    %894 = vmatprep.subr.mxu0 0.0
    %895 = vmatpush1.msra.mxu0 0.0
    %896 = vmatprep.subr.mxu0 0.0
    %897 = vmatpush1.msra.mxu0 0.0
    %898 = vmatprep.subr.mxu0 0.0
    %899 = vmatpush1.msra.mxu0 0.0
    %900 = vmatprep.mubr.f32.mxu0 0.0
    %901 = vmatmul.mubr.f32.gmra.mrb[0].mxu0 %v834
    %v902 = vpop.f32.mrb[0].mxu0
    %v903 = vadd.f32 0.0, %v902
    %v904 = vpop.f32.mrb[0].mxu0
    %905 = vdwg.mxu0
    %v906 = vadd.f32 %v830, %v903
    %v907 = vxor.u32 %v906, 2147483648
    %v908 = vmul.f32 %v907, 1.442695
    %v909 = vpow.pop %v908
    %v910 = vadd.f32 %v909, 1.0
    %v911 = vrcp.pop %v910
    %v912 = vmul.f32 1.0, %v911
    %v913 = vtanh.pop %v906
    %v914 = vmul.f32 %v912, %v823
    %916 = vrot.lane.b32.xlu0 %v913, 64
    %v917 = vpop.permute.xlu0 %916
    %v919 = vmul.f32 %v912, %v917
    %921 = vrot.lane.b32.xlu0 %v919, 32
    %v922 = vpop.permute.xlu0 %921
    %v924 = vadd.f32 %v914, %v922
    %v925 = vtanh.pop %v924
    %927 = vrot.lane.b32.xlu0 %v925, 64
    %v928 = vpop.permute.xlu0 %927
    %v930 = vmul.f32 %v912, %v928
    %v931 = vld [vmem:[%s4] sm:$0xff]
    %v932 = vld [vmem:[%s4 + $0x8] sm:$0xff]
    %v933 = vld [vmem:[%s4 + $0x10] sm:$0xff]
    %v934 = vld [vmem:[%s4 + $0x18] sm:$0xff]
    %v935 = vld [vmem:[%s5] sm:$0x1]
    %937 = vrot.lane.b32.xlu0 %v930, 32
    %v938 = vpop.permute.xlu0 %937
    %v939 = vsel %vm125, %v938, 0
    %941 = vmatprep.subr.mxu0 0.0
    %942 = vmatpush1.msra.mxu0 %v931
    %943 = vmatprep.subr.mxu0 0.0
    %944 = vmatpush1.msra.mxu0 %v932
    %945 = vmatprep.subr.mxu0 0.0
    %946 = vmatpush1.msra.mxu0 %v933
    %947 = vmatprep.subr.mxu0 0.0
    %948 = vmatpush1.msra.mxu0 %v934
    %949 = vmatprep.subr.mxu0 0.0
    %950 = vmatpush1.msra.mxu0 0.0
    %951 = vmatprep.subr.mxu0 0.0
    %952 = vmatpush1.msra.mxu0 0.0
    %953 = vmatprep.subr.mxu0 0.0
    %954 = vmatpush1.msra.mxu0 0.0
    %955 = vmatprep.subr.mxu0 0.0
    %956 = vmatpush1.msra.mxu0 0.0
    %957 = vmatprep.subr.mxu0 0.0
    %958 = vmatpush1.msra.mxu0 0.0
    %959 = vmatprep.subr.mxu0 0.0
    %960 = vmatpush1.msra.mxu0 0.0
    %961 = vmatprep.subr.mxu0 0.0
    %962 = vmatpush1.msra.mxu0 0.0
    %963 = vmatprep.subr.mxu0 0.0
    %964 = vmatpush1.msra.mxu0 0.0
    %965 = vmatprep.subr.mxu0 0.0
    %966 = vmatpush1.msra.mxu0 0.0
    %967 = vmatprep.subr.mxu0 0.0
    %968 = vmatpush1.msra.mxu0 0.0
    %969 = vmatprep.subr.mxu0 0.0
    %970 = vmatpush1.msra.mxu0 0.0
    %971 = vmatprep.subr.mxu0 0.0
    %972 = vmatpush1.msra.mxu0 0.0
    %973 = vmatprep.subr.mxu0 0.0
    %974 = vmatpush1.msra.mxu0 0.0
    %975 = vmatprep.subr.mxu0 0.0
    %976 = vmatpush1.msra.mxu0 0.0
    %977 = vmatprep.subr.mxu0 0.0
    %978 = vmatpush1.msra.mxu0 0.0
    %979 = vmatprep.subr.mxu0 0.0
    %980 = vmatpush1.msra.mxu0 0.0
    %981 = vmatprep.subr.mxu0 0.0
    %982 = vmatpush1.msra.mxu0 0.0
    %983 = vmatprep.subr.mxu0 0.0
    %984 = vmatpush1.msra.mxu0 0.0
    %985 = vmatprep.subr.mxu0 0.0
    %986 = vmatpush1.msra.mxu0 0.0
    %987 = vmatprep.subr.mxu0 0.0
    %988 = vmatpush1.msra.mxu0 0.0
    %989 = vmatprep.subr.mxu0 0.0
    %990 = vmatpush1.msra.mxu0 0.0
    %991 = vmatprep.subr.mxu0 0.0
    %992 = vmatpush1.msra.mxu0 0.0
    %993 = vmatprep.subr.mxu0 0.0
    %994 = vmatpush1.msra.mxu0 0.0
    %995 = vmatprep.subr.mxu0 0.0
    %996 = vmatpush1.msra.mxu0 0.0
    %997 = vmatprep.subr.mxu0 0.0
    %998 = vmatpush1.msra.mxu0 0.0
    %999 = vmatprep.subr.mxu0 0.0
    %1000 = vmatpush1.msra.mxu0 0.0
    %1001 = vmatprep.subr.mxu0 0.0
    %1002 = vmatpush1.msra.mxu0 0.0
    %1003 = vmatprep.subr.mxu0 0.0
    %1004 = vmatpush1.msra.mxu0 0.0
    %1005 = vmatprep.mubr.f32.mxu0 0.0
    %1006 = vmatmul.mubr.f32.gmra.mrb[0].mxu0 %v939
    %v1007 = vpop.f32.mrb[0].mxu0
    %v1008 = vadd.f32 %v935, %v1007
    %v1009 = vpop.f32.mrb[0].mxu0
    %1010 = vdwg.mxu0
    %vm1011 = vcmask 24576
    %1012 = vst.msk [vmem:[#allocation6] sm:$0x1] %vm1011, %v1008
    // Predicated region
    $region30: #{lstm_forward.1} parent=1 // pred_check
      _
    $region31: #{lstm_forward.1} parent=1 // pred_check_branch
      %1014 = sbr.rel (0) target = $region33
    $region32: #{lstm_forward.1} parent=1 // pred_region
      %s1016 = ssub.s32 16, 16
      %1017 = vsyncadd [#allocation5], %s1016
      %s1019 = sshll.u32 [#allocation6], 4
      %s1020 = int_to_ptr.vmem [resolvable:$true] %s1019
      %1022 = dma.vmem_to_hbm [thread:$0]  %s1020, 16, %s6, [#allocation5]
    $region33: #{lstm_forward.1} parent=1 // pred_fallthru
      _
    // Predicated region
    $region34: #{lstm_forward.1} parent=1 // pred_check
      _
    $region35: #{lstm_forward.1} parent=1 // pred_check_branch
      %1024 = sbr.rel (0) target = $region37
    $region36: #{lstm_forward.1} parent=1 // pred_region
      %1025 = dma.done [#allocation5], 16
    $region37: #{lstm_forward.1} parent=1 // pred_fallthru
      _
    %1026 = vsyncpa [#allocation4], 1
    %1027 = vsyncpa [#allocation5], 1

</llo_original>
